<compile_context>
chip_gen: v5e
topology: v5e:2x2
jax: 0.10.0
libtpu: 0.0.40
codegen_flags: <defaults>
</compile_context>

<pallas_src>
import jax
import jax.numpy as jnp
from jax.experimental import pallas as pl
from jax.experimental.pallas import tpu as pltpu


def _cdiv(a, b):
    return -(-a // b)


def _round_up(a, b):
    return _cdiv(a, b) * b


def _make_mlp_kernel(transposed_out):
    def kernel(x_ref, w_ref, b_ref, o_ref):
        # x_ref: (1, C, TN) native flattened-NCHW slab; lane axis = N (dense).
        x_cn = x_ref[0]
        if transposed_out:
            # E < 128: (E, TN) = w_ce^T @ x_cn -> lane-dense output block.
            y = jax.lax.dot_general(
                w_ref[...], x_cn,
                dimension_numbers=(((0,), (0,)), ((), ())),
                preferred_element_type=jnp.float32,
            )
            y = y + b_ref[...].astype(jnp.float32)        # (E, 1) over lanes
        else:
            # E >= 128: (TN, E) = x_cn^T @ w_ce, last dim already lane-dense.
            y = jax.lax.dot_general(
                x_cn, w_ref[...],
                dimension_numbers=(((0,), (0,)), ((), ())),
                preferred_element_type=jnp.float32,
            )
            y = y + b_ref[...].astype(jnp.float32)        # (1, E) over sublanes
        o_ref[0] = y.astype(o_ref.dtype)

    return kernel


def _vmem_caps():
    """(physical VMEM bytes, tile-sizing budget with headroom)."""
    try:
        cap = int(pltpu.get_tpu_info().vmem_capacity_bytes)
    except Exception:
        cap = 64 << 20  # conservative: v7x per-TensorCore physical VMEM
    return cap, min(cap // 2, 32 << 20)


def mlp_forward(x_nchw, weight_ec, bias_e, *, tile_n=None, out_dtype=None):
    """Matches PyTorch MLP.forward: NCHW -> (B, H*W, img_size)."""
    B, C, H, W = x_nchw.shape
    E, C_w = weight_ec.shape
    assert C_w == C, "weight must be (img_size, input_dim) like nn.Linear"
    N = H * W
    out_dtype = x_nchw.dtype if out_dtype is None else jnp.dtype(out_dtype)

    # flatten(2) only: contiguous (B, C, H, W) -> (B, C, N), pure metadata.
    x_bcn = x_nchw.reshape(B, C, N)
    # nn.Linear weight is (E, C); kernel wants (C, E). One-time tiny transpose.
    w_ce = weight_ec.T
    transposed_out = E < 128                      # lane-dense store path
    b_blk = bias_e.reshape(E, 1) if transposed_out else bias_e.reshape(1, E)

    x_bytes = jnp.dtype(x_bcn.dtype).itemsize
    w_bytes = jnp.dtype(w_ce.dtype).itemsize
    o_bytes = jnp.dtype(out_dtype).itemsize

    # --- VMEM-aware N-tile selection (generous layout-padding estimates). ---
    c_pad = _round_up(C, 32)
    e_lane = _round_up(E, 128)
    x_col = c_pad * x_bytes                                   # x bytes per N column
    o_col = (_round_up(E, 32) if transposed_out else e_lane) * o_bytes
    resident = 2 * (c_pad * e_lane * w_bytes + 8 * 128 * w_bytes)  # weight+bias (dbl buf)
    vmem_cap, budget = _vmem_caps()

    if tile_n is None:
        tn = (max(budget - resident, 0) // (2 * (x_col + o_col))) // 128 * 128
        tn = max(128, min(tn, 4096))
    else:
        tn = max(128, _round_up(int(tile_n), 128))
    tn = min(tn, _round_up(N, 128))               # never bigger than (padded) data
    # v7x megacore: with B == 1 make sure the grid still has >= 2 parallel steps.
    if B == 1 and tn >= N and N > 128:
        tn = 128 * _cdiv(N, 256)

    # Pad N to a multiple of tn (replaces the old full-N fallback that could
    # blow VMEM for large non-128-divisible N); padding is sliced off below.
    n_pad = _round_up(N, tn)
    if n_pad != N:
        x_bcn = jnp.pad(x_bcn, ((0, 0), (0, 0), (0, n_pad - N)))
    grid = (B, n_pad // tn)

    footprint = 2 * tn * (x_col + o_col) + resident
    vmem_limit = int(min(max(footprint + (8 << 20), 32 << 20), (vmem_cap * 7) // 8))

    if transposed_out:
        out_kshape = (B, E, n_pad)
        out_spec = pl.BlockSpec((1, E, tn), lambda b, n: (b, 0, n))
        b_spec = pl.BlockSpec((E, 1), lambda b, n: (0, 0))
    else:
        out_kshape = (B, n_pad, E)
        out_spec = pl.BlockSpec((1, tn, E), lambda b, n: (b, n, 0))
        b_spec = pl.BlockSpec((1, E), lambda b, n: (0, 0))

    # TODO(synk): mark weight/bias specs pipeline_mode=pl.Buffered(1) (single-
    # buffered residents, constant index map) once single-buffer pipeline_mode
    # is confirmed to lower in the deployed jax; omitted to guarantee compile.

    cost = pl.CostEstimate(
        flops=2 * B * n_pad * C * E,
        transcendentals=0,
        bytes_accessed=(B * C * n_pad * x_bytes + C * E * w_bytes
                        + E * w_bytes + B * n_pad * E * o_bytes),
    )

    out_k = pl.pallas_call(
        _make_mlp_kernel(transposed_out),
        out_shape=jax.ShapeDtypeStruct(out_kshape, out_dtype),
        grid_spec=pltpu.PrefetchScalarGridSpec(
            num_scalar_prefetch=0,
            grid=grid,
            in_specs=[
                # x: one (C, TN) column slab per step (lane axis = N, dense).
                pl.BlockSpec((1, C, tn), lambda b, n: (b, 0, n)),
                # weight / bias: constant index map -> VMEM-resident.
                pl.BlockSpec((C, E), lambda b, n: (0, 0)),
                b_spec,
            ],
            out_specs=out_spec,
        ),
        compiler_params=pltpu.CompilerParams(
            dimension_semantics=("parallel", "parallel"),
            vmem_limit_bytes=vmem_limit,
        ),
        cost_estimate=cost,
    )(x_bcn, w_ce, b_blk)

    if transposed_out:
        # Small-E outputs are small in absolute bytes; the lane-dense kernel
        # store + this cheap swap beats per-step masked stores.
        return jnp.swapaxes(out_k[:, :, :N], 1, 2)
    return out_k[:, :N, :]


if __name__ == "__main__":
    key = jax.random.PRNGKey(0)
    k_x, k_w, k_b, k_x2, k_w2, k_b2 = jax.random.split(key, 6)

    # ---- Config A: small-E head (E < 128 -> lane-dense transposed path). ----
    B, C, H, W = 2, 8, 16, 16
    E = 32
    x = jax.random.normal(k_x, (B, C, H, W), dtype=jnp.float32)
    weight = jax.random.normal(k_w, (E, C), dtype=jnp.float32) * 0.1   # nn.Linear (E, C)
    bias = jax.random.normal(k_b, (E,), dtype=jnp.float32) * 0.1

    out = jax.block_until_ready(mlp_forward(x, weight, bias))
    x_bnc = x.reshape(B, C, H * W).transpose(0, 2, 1)
    ref = jnp.einsum("bnc,ec->bne", x_bnc, weight,
                     precision=jax.lax.Precision.HIGHEST) + bias
    assert out.shape == (B, H * W, E)
    assert jnp.allclose(out, ref, atol=2e-4, rtol=2e-4)

    # bf16 I/O (halves HBM bytes; accumulation stays f32 in-kernel).
    out_bf16 = jax.block_until_ready(
        mlp_forward(x.astype(jnp.bfloat16), weight.astype(jnp.bfloat16),
                    bias.astype(jnp.bfloat16)))
    assert out_bf16.dtype == jnp.bfloat16
    assert jnp.allclose(out_bf16.astype(jnp.float32), ref, atol=5e-2, rtol=5e-2)

    # f32 activations, bf16 output (out_dtype knob; output bytes dominate).
    out_mix = jax.block_until_ready(mlp_forward(x, weight, bias, out_dtype=jnp.bfloat16))
    assert out_mix.dtype == jnp.bfloat16
    assert jnp.allclose(out_mix.astype(jnp.float32), ref, atol=5e-2, rtol=5e-2)

    # ---- Config B: E >= 128 direct path + non-128-divisible N (padding). ----
    B2, C2, H2, W2 = 1, 8, 10, 10
    E2 = 128
    x2 = jax.random.normal(k_x2, (B2, C2, H2, W2), dtype=jnp.float32)
    weight2 = jax.random.normal(k_w2, (E2, C2), dtype=jnp.float32) * 0.1
    bias2 = jax.random.normal(k_b2, (E2,), dtype=jnp.float32) * 0.1

    out2 = jax.block_until_ready(mlp_forward(x2, weight2, bias2))
    x2_bnc = x2.reshape(B2, C2, H2 * W2).transpose(0, 2, 1)
    ref2 = jnp.einsum("bnc,ec->bne", x2_bnc, weight2,
                      precision=jax.lax.Precision.HIGHEST) + bias2
    assert out2.shape == (B2, H2 * W2, E2)
    assert jnp.allclose(out2, ref2, atol=2e-4, rtol=2e-4)

    print("KERNEL_OK")
</pallas_src>

<mosaic_0001>
module attributes {stable_mosaic.version = 11 : i64} {
  func.func @kernel(%arg0: i32, %arg1: i32, %arg2: memref<1x8x256xf32, #tpu.memory_space<vmem>>, %arg3: memref<8x32xf32, #tpu.memory_space<vmem>>, %arg4: memref<32x1xf32, #tpu.memory_space<vmem>>, %arg5: memref<1x32x256xf32, #tpu.memory_space<vmem>>) attributes {dimension_semantics = [#tpu.dimension_semantics<parallel>, #tpu.dimension_semantics<parallel>], iteration_bounds = array<i64: 2, 1>, scalar_prefetch = 0 : i64, scratch_operands = 0 : i64, tpu.core_type = #tpu.core_type<tc>, window_params = [{transform_indices = @transform_0, window_bounds = array<i64: 1, 8, 256>}, {pipeline_mode = #tpu.pipeline_mode<synchronous>, transform_indices = @transform_1, window_bounds = array<i64: 8, 32>}, {pipeline_mode = #tpu.pipeline_mode<synchronous>, transform_indices = @transform_2, window_bounds = array<i64: 32, 1>}, {transform_indices = @transform_3, window_bounds = array<i64: 1, 32, 256>}]} {
    %c0 = arith.constant 0 : index
    %c0_0 = arith.constant 0 : index
    %c0_1 = arith.constant 0 : index
    %0 = vector.load %arg2[%c0, %c0_0, %c0_1] : memref<1x8x256xf32, #tpu.memory_space<vmem>>, vector<1x8x256xf32>
    %1 = vector.shape_cast %0 : vector<1x8x256xf32> to vector<8x256xf32>
    %c0_2 = arith.constant 0 : index
    %c0_3 = arith.constant 0 : index
    %2 = vector.load %arg3[%c0_2, %c0_3] : memref<8x32xf32, #tpu.memory_space<vmem>>, vector<8x32xf32>
    %cst = arith.constant dense<0.000000e+00> : vector<32x256xf32>
    %3 = tpu.matmul %2, %1, %cst {dimension_numbers = #tpu.dot_dimension_numbers<[0], [0], [1], [1], [0, 1, 1, 1], [], []>} : vector<8x32xf32>, vector<8x256xf32>, vector<32x256xf32> -> vector<32x256xf32>
    %c0_4 = arith.constant 0 : index
    %c0_5 = arith.constant 0 : index
    %4 = vector.load %arg4[%c0_4, %c0_5] : memref<32x1xf32, #tpu.memory_space<vmem>>, vector<32x1xf32>
    %5 = vector.broadcast %4 : vector<32x1xf32> to vector<32x256xf32>
    %6 = arith.addf %3, %5 : vector<32x256xf32>
    %c0_6 = arith.constant 0 : index
    %c0_7 = arith.constant 0 : index
    %c0_8 = arith.constant 0 : index
    %7 = vector.load %arg5[%c0_6, %c0_7, %c0_8] : memref<1x32x256xf32, #tpu.memory_space<vmem>>, vector<1x32x256xf32>
    %8 = vector.shape_cast %7 : vector<1x32x256xf32> to vector<32x256xf32>
    %9 = vector.shape_cast %6 : vector<32x256xf32> to vector<1x32x256xf32>
    tpu.vector_store %arg5[%c0_6, %c0_7, %c0_8], %9 {strides = array<i32>} : memref<1x32x256xf32, #tpu.memory_space<vmem>>, vector<1x32x256xf32>,
    return
  }
  func.func @transform_0(%arg0: i32, %arg1: i32) -> (i32, i32, i32) {
    %c0_i32 = arith.constant 0 : i32
    %c0_i32_0 = arith.constant 0 : i32
    return %arg0, %c0_i32, %arg1 : i32, i32, i32
  }
  func.func @transform_1(%arg0: i32, %arg1: i32) -> (i32, i32) {
    %c0_i32 = arith.constant 0 : i32
    %c0_i32_0 = arith.constant 0 : i32
    %c0_i32_1 = arith.constant 0 : i32
    return %c0_i32, %c0_i32_0 : i32, i32
  }
  func.func @transform_2(%arg0: i32, %arg1: i32) -> (i32, i32) {
    %c0_i32 = arith.constant 0 : i32
    %c0_i32_0 = arith.constant 0 : i32
    %c0_i32_1 = arith.constant 0 : i32
    return %c0_i32, %c0_i32_0 : i32, i32
  }
  func.func @transform_3(%arg0: i32, %arg1: i32) -> (i32, i32, i32) {
    %c0_i32 = arith.constant 0 : i32
    %c0_i32_0 = arith.constant 0 : i32
    return %arg0, %c0_i32, %arg1 : i32, i32, i32
  }
}

</mosaic_0001>

<llo_original>
// kernel: tpu_custom_call.1
$region0: #{tpu_custom_call.1}
  #allocation0 [shape = 'u32[]', space=smem, size = 0x4, offset = 0x4, fixed_abs, tag = 'smem constant byte address 0x4 - core index']
  #allocation1 [shape = 'u32[72,128]{1,0:T(1,128)}', space=vmem, size = 0x9000, scoped, tag = 'internal scratch']
  %s0 = inlined_call_operand.vmem [shape: f32[2,8,256], index: 0, kind: input, shape index: {}]
  %s1 = inlined_call_operand.hbm [shape: f32[8,32], index: 1, kind: input, shape index: {}]
  %s2 = inlined_call_operand.vmem [shape: f32[32,1], index: 2, kind: input, shape index: {}]
  %s3 = inlined_call_operand.hbm [shape: f32[2,32,256], index: 3, kind: output, shape index: {}]
  %s4 = sld [smem:[#allocation0]]
  $region49: #{tpu_custom_call.1} parent=0
    _
  %s6 = ssub.s32 1, %s4
  %s7 = scalar_select 0, %s6, %s4
  $region1: #{tpu_custom_call.1} parent=0
    #allocation2 [shape = 'u8[4096]{0}', space=vmem, size = 0x1000, scoped, tag = 'input window, operand 1, single buffered']
    #allocation3 [shape = 's32[2]{0}', space=sflag, size = 0x8, scoped, tag = 'scoped memory for tpu_custom_call.1']
    #allocation4 [shape = 's32[2]{0}', space=sflag, size = 0x8, scoped, tag = 'scoped memory for tpu_custom_call.1']
    #allocation5 [shape = 'u8[65536]{0}', space=vmem, size = 0x10000, scoped, tag = 'output window, operand 0']
    %8 = vsyncpa [#allocation3], 0
    %9 = vsyncpa [#allocation4], 0
    %s10 = scalar_lea.sflag [#allocation4], 1
    %11 = vsyncpa %s10, 0
    loop: start=0, step=1, limit=4
    $region2: #{tpu_custom_call.1} parent=1 // loop_pre_header
      _
    $region3: #{tpu_custom_call.1} parent=1 // loop_header
      %s13 = sphi 0, %s17
      %p14 = scmp.ge.s32.totalorder %s13, 4
      %s20 = sphi 0, %s32
      %s21 = sphi 0, %s28
      %s22 = sphi 0, %s20
      %s23 = sphi 0, %s21
      %s24 = sphi 0, %s22
      %s25 = sphi 0, %s23
      %s37 = sphi 0, %s39
      %s40 = sphi 0, %s37
      %s41 = sphi 0, %s40
      %s57 = sphi 0, %s41
      %s61 = sphi 0, %s61
      %s63 = sphi 0, %s61
      %s64 = sphi 0, %s63
      %s78 = sphi 0, %s64
      %s82 = sphi 0, %s82
      %s84 = sphi 0, %s82
      %s85 = sphi 0, %s84
      %s99 = sphi 0, %s85
      %s107 = sphi 0, %s109
      %s110 = sphi 0, %s107
      %s111 = sphi 0, %s110
      %s127 = sphi 0, %s111
    $region4: #{tpu_custom_call.1} parent=1 // loop_header_branch
      %16 = sbr.rel (%p14) target = $region8
    $region5: #{tpu_custom_call.1} parent=1 // loop_body
      %s18 = ssub.s32 %s13, 1
      %s19 = ssub.s32 %s13, 2
      %s26 = sadd.s32 1, %s21
      %p27 = scmp.ge.s32.totalorder %s26, 1
      %s28 = scalar_select %p27, 0, %s26
      %s29 = sadd.s32 1, %s20
      %s30 = scalar_select %p27, %s29, %s20
      %p31 = scmp.ge.s32.totalorder %s30, 2
      %s32 = scalar_select %p31, 0, %s30
      %s33 = ssub.s32 %s20, %s32
      %s34 = ssub.s32 %s21, %s28
      %s35 = sor.u32 %s33, %s34
      %p36 = scmp.eq.s32.totalorder %s35, 0
      %s38 = sadd.s32 %s37, 1
      %s39 = scalar_select %p36, %s37, %s38
      %p42 = pneg %p36
      %p43 = scmp.eq.s32.totalorder %s13, 1
      %p44 = por %p42, %p43
      %p45 = scmp.ne.s32.totalorder %s37, %s40
      %p46 = scmp.eq.s32.totalorder %s13, 0
      %p47 = por %p45, %p46
      %p48 = scmp.ne.s32.totalorder %s37, %s40
      %p49 = scmp.eq.s32.totalorder %s18, 1
      %p50 = por %p48, %p49
      %p51 = scmp.ne.s32.totalorder %s40, %s41
      %p52 = scmp.eq.s32.totalorder %s18, 0
      %p53 = por %p51, %p52
      %p54 = scmp.ne.s32.totalorder %s40, %s41
      %p55 = scmp.eq.s32.totalorder %s19, 1
      %p56 = por %p54, %p55
      %p58 = scmp.ne.s32.totalorder %s41, %s57
      %p59 = scmp.eq.s32.totalorder %s19, 0
      %p60 = por %p58, %p59
      %s62 = sadd.s32 %s61, 1
      %p65 = scmp.eq.s32.totalorder %s13, 1
      %p66 = scmp.ne.s32.totalorder %s61, %s63
      %p67 = scmp.eq.s32.totalorder %s13, 0
      %p68 = por %p66, %p67
      %p69 = scmp.ne.s32.totalorder %s61, %s63
      %p70 = scmp.eq.s32.totalorder %s18, 1
      %p71 = por %p69, %p70
      %p72 = scmp.ne.s32.totalorder %s63, %s64
      %p73 = scmp.eq.s32.totalorder %s18, 0
      %p74 = por %p72, %p73
      %p75 = scmp.ne.s32.totalorder %s63, %s64
      %p76 = scmp.eq.s32.totalorder %s19, 1
      %p77 = por %p75, %p76
      %p79 = scmp.ne.s32.totalorder %s64, %s78
      %p80 = scmp.eq.s32.totalorder %s19, 0
      %p81 = por %p79, %p80
      %s83 = sadd.s32 %s82, 1
      %p86 = scmp.eq.s32.totalorder %s13, 1
      %p87 = scmp.ne.s32.totalorder %s82, %s84
      %p88 = scmp.eq.s32.totalorder %s13, 0
      %p89 = por %p87, %p88
      %p90 = scmp.ne.s32.totalorder %s82, %s84
      %p91 = scmp.eq.s32.totalorder %s18, 1
      %p92 = por %p90, %p91
      %p93 = scmp.ne.s32.totalorder %s84, %s85
      %p94 = scmp.eq.s32.totalorder %s18, 0
      %p95 = por %p93, %p94
      %p96 = scmp.ne.s32.totalorder %s84, %s85
      %p97 = scmp.eq.s32.totalorder %s19, 1
      %p98 = por %p96, %p97
      %p100 = scmp.ne.s32.totalorder %s85, %s99
      %p101 = scmp.eq.s32.totalorder %s19, 0
      %p102 = por %p100, %p101
      %s103 = ssub.s32 %s20, %s32
      %s104 = ssub.s32 %s21, %s28
      %s105 = sor.u32 %s103, %s104
      %p106 = scmp.eq.s32.totalorder %s105, 0
      %s108 = sadd.s32 %s107, 1
      %s109 = scalar_select %p106, %s107, %s108
      %p112 = pneg %p106
      %p113 = scmp.eq.s32.totalorder %s13, 1
      %p114 = por %p112, %p113
      %p115 = scmp.ne.s32.totalorder %s107, %s110
      %p116 = scmp.eq.s32.totalorder %s13, 0
      %p117 = por %p115, %p116
      %p118 = scmp.ne.s32.totalorder %s107, %s110
      %p119 = scmp.eq.s32.totalorder %s18, 1
      %p120 = por %p118, %p119
      %p121 = scmp.ne.s32.totalorder %s110, %s111
      %p122 = scmp.eq.s32.totalorder %s18, 0
      %p123 = por %p121, %p122
      %p124 = scmp.ne.s32.totalorder %s110, %s111
      %p125 = scmp.eq.s32.totalorder %s19, 1
      %p126 = por %p124, %p125
      %p128 = scmp.ne.s32.totalorder %s111, %s127
      %p129 = scmp.eq.s32.totalorder %s19, 0
      %p130 = por %p128, %p129
      %p131 = scmp.le.s32.totalorder 1, %s13
      %p132 = scmp.lt.s32.totalorder %s13, 3
      %p133 = pnand %p131, %p132
      %p134 = pneg %p133
      // Predicated region
      $region9: #{tpu_custom_call.1} parent=5 // pred_check
        _
      $region10: #{tpu_custom_call.1} parent=5 // pred_check_branch
        %136 = sbr.rel (%p133) target = $region12
      $region11: #{tpu_custom_call.1} parent=5 // pred_region
        %s137 = ssub.s32 %s13, 1
        // Predicated region
        $region13: #{tpu_custom_call.1} parent=11 // pred_check
          %p138 = pneg %p74
        $region14: #{tpu_custom_call.1} parent=11 // pred_check_branch
          %140 = sbr.rel (%p138) target = $region16
        $region15: #{tpu_custom_call.1} parent=11 // pred_region
          %142 = vsyncadd [#allocation3], 0
          %s144 = sshll.u32 %s1, 4
          %s145 = int_to_ptr.hbm [resolvable:$true] %s144
          %s146 = sshll.u32 [#allocation2], 4
          %s147 = int_to_ptr.vmem [resolvable:$true] %s146
          %149 = dma.hbm_to_vmem [thread:$0]  %s145, 128, %s147, [#allocation3]
        $region16: #{tpu_custom_call.1} parent=11 // pred_fallthru
          _
        // Predicated region
        $region17: #{tpu_custom_call.1} parent=11 // pred_check
          %p150 = pneg %p95
        $region18: #{tpu_custom_call.1} parent=11 // pred_check_branch
          %152 = sbr.rel (%p150) target = $region20
        $region19: #{tpu_custom_call.1} parent=11 // pred_region
          _
        $region20: #{tpu_custom_call.1} parent=11 // pred_fallthru
          _
      $region12: #{tpu_custom_call.1} parent=5 // pred_fallthru
        _
      %p153 = scmp.lt.s32.totalorder %s13, 2
      // Predicated region
      $region21: #{tpu_custom_call.1} parent=5 // pred_check
        %p154 = pneg %p153
      $region22: #{tpu_custom_call.1} parent=5 // pred_check_branch
        %156 = sbr.rel (%p154) target = $region24
      $region23: #{tpu_custom_call.1} parent=5 // pred_region
        // Predicated region
        $region25: #{tpu_custom_call.1} parent=23 // pred_check
          %p157 = pneg %p47
        $region26: #{tpu_custom_call.1} parent=23 // pred_check_branch
          %159 = sbr.rel (%p157) target = $region28
        $region27: #{tpu_custom_call.1} parent=23 // pred_region
          %s160 = smul.u32 2, %s21
          %p161 = scmp.lt.s32.totalorder %s20, 1
          %s162 = scalar_select %p161, %s20, 1
          %p163 = scmp.lt.s32.totalorder %s160, 1
          %s164 = scalar_select %p163, %s160, 1
          %s165 = smul.addr %s162, 2
          %s166 = sadd.s32 %s164, %s165
          %s167 = smul.addr %s166, 8
          %s168 = scalar_lea.vmem %s0, %s167
          %s169 = smul.u32 2, %s21
        $region28: #{tpu_custom_call.1} parent=23 // pred_fallthru
          _
      $region24: #{tpu_custom_call.1} parent=5 // pred_fallthru
        _
      %p170 = scmp.le.s32.totalorder 1, %s13
      %p171 = scmp.lt.s32.totalorder %s13, 3
      %p172 = pnand %p170, %p171
      %p173 = pneg %p172
      // Predicated region
      $region29: #{tpu_custom_call.1} parent=5 // pred_check
        _
      $region30: #{tpu_custom_call.1} parent=5 // pred_check_branch
        %175 = sbr.rel (%p172) target = $region32
      $region31: #{tpu_custom_call.1} parent=5 // pred_region
        %s176 = ssub.s32 %s13, 1
        // Predicated region
        $region33: #{tpu_custom_call.1} parent=31 // pred_check
          %p177 = pneg %p74
        $region34: #{tpu_custom_call.1} parent=31 // pred_check_branch
          %179 = sbr.rel (%p177) target = $region36
        $region35: #{tpu_custom_call.1} parent=31 // pred_region
          %181 = dma.done [#allocation3], 128
        $region36: #{tpu_custom_call.1} parent=31 // pred_fallthru
          _
        %s182 = smul.u32 2, %s23
        %p183 = scmp.lt.s32.totalorder %s22, 1
        %s184 = scalar_select %p183, %s22, 1
        %p185 = scmp.lt.s32.totalorder %s182, 1
        %s186 = scalar_select %p185, %s182, 1
        %s187 = smul.addr %s184, 2
        %s188 = sadd.s32 %s186, %s187
        %s189 = smul.addr %s188, 8
        %s190 = scalar_lea.vmem %s0, %s189
        %p191 = pneg %p53
        %p192 = pneg %p50
        %p193 = pneg %p74
        %p194 = pneg %p71
        %p195 = pneg %p95
        %p196 = pneg %p92
        %p197 = pneg %p123
        %p198 = pneg %p120
        %s199 = sand.u32 %s110, 1
        %s200 = scalar_lea.sflag [#allocation4], %s199
        %s201 = sand.u32 %s110, 1
        %s202 = smul.addr %s201, 64
        %s203 = scalar_lea.vmem [#allocation5], %s202
        %s204 = smul.u32 2, %s23
        %p205 = scmp.lt.s32.totalorder %s22, 1
        %s206 = scalar_select %p205, %s22, 1
        %p207 = scmp.lt.s32.totalorder %s204, 1
        %s208 = scalar_select %p207, %s204, 1
        %s209 = smul.addr %s206, 2
        %s210 = sadd.s32 %s208, %s209
        %s211 = smul.addr %s210, 8
        %s212 = scalar_lea.vmem %s0, %s211
        %s213 = smul.u32 2, %s23
        %s214 = smul.u32 2, %s23
        %v215 = vld [vmem:[%s212] sm:$0xff]
        %v216 = vld [vmem:[%s212 + $0x8] sm:$0xff]
        %v217 = vld [vmem:[#allocation2] sm:$0xff]
        %v218 = vld [vmem:[%s2] sm:$0xff]
        %v219 = vld [vmem:[%s2 + $0x8] sm:$0xff]
        %v220 = vld [vmem:[%s2 + $0x10] sm:$0xff]
        %v221 = vld [vmem:[%s2 + $0x18] sm:$0xff]
        %223 = vset.pattern.permute.xlu0 0
        %224 = vperm.xlu0 %223, %v218
        %v225 = vpop.permute.xlu0 %224
        %228 = vset.pattern.permute.xlu0 0
        %229 = vperm.xlu0 %228, %v219
        %v230 = vpop.permute.xlu0 %229
        %233 = vset.pattern.permute.xlu0 0
        %234 = vperm.xlu0 %233, %v220
        %v235 = vpop.permute.xlu0 %234
        %238 = vset.pattern.permute.xlu0 0
        %239 = vperm.xlu0 %238, %v221
        %v240 = vpop.permute.xlu0 %239
        %242 = vxpose.xlu0.b32.start [1/16] %v217, 128
        %243 = vxpose.xlu0.b32.cont [2/16] 0.0, 128
        %244 = vxpose.xlu0.b32.cont [3/16] 0.0, 128
        %245 = vxpose.xlu0.b32.cont [4/16] 0.0, 128
        %246 = vxpose.xlu0.b32.cont [5/16] 0.0, 128
        %247 = vxpose.xlu0.b32.cont [6/16] 0.0, 128
        %248 = vxpose.xlu0.b32.cont [7/16] 0.0, 128
        %249 = vxpose.xlu0.b32.cont [8/16] 0.0, 128
        %250 = vxpose.xlu0.b32.cont [9/16] 0.0, 128
        %251 = vxpose.xlu0.b32.cont [10/16] 0.0, 128
        %252 = vxpose.xlu0.b32.cont [11/16] 0.0, 128
        %253 = vxpose.xlu0.b32.cont [12/16] 0.0, 128
        %254 = vxpose.xlu0.b32.cont [13/16] 0.0, 128
        %255 = vxpose.xlu0.b32.cont [14/16] 0.0, 128
        %256 = vxpose.xlu0.b32.cont [15/16] 0.0, 128
        %257 = vxpose.xlu0.b32.end [16/16] 0.0, 128
        %v258 = vpop.trf.xlu0
        %v259 = vpop.trf.xlu0
        %v260 = vpop.trf.xlu0
        %v261 = vpop.trf.xlu0
        %v262 = vpop.trf.xlu0
        %v263 = vpop.trf.xlu0
        %v264 = vpop.trf.xlu0
        %v265 = vpop.trf.xlu0
        %v266 = vpop.trf.xlu0
        %v267 = vpop.trf.xlu0
        %v268 = vpop.trf.xlu0
        %v269 = vpop.trf.xlu0
        %v270 = vpop.trf.xlu0
        %v271 = vpop.trf.xlu0
        %v272 = vpop.trf.xlu0
        %v273 = vpop.trf.xlu0
        %vm274 = vcmask 64512
        %v276 = vsel %vm274, %v258, 0
        %v279 = vsel %vm274, %v259, 0
        %v282 = vsel %vm274, %v260, 0
        %v285 = vsel %vm274, %v261, 0
        %287 = vmatpush.msra.mxu0 0.0
        %288 = vmatpush.msra.mxu0 0.0
        %289 = vmatpush.msra.mxu0 0.0
        %290 = vmatpush.msra.mxu0 0.0
        %291 = vmatpush.msra.mxu0 0.0
        %292 = vmatpush.msra.mxu0 0.0
        %293 = vmatpush.msra.mxu0 0.0
        %294 = vmatpush.msra.mxu0 0.0
        %295 = vmatpush.msra.mxu0 0.0
        %296 = vmatpush.msra.mxu0 0.0
        %297 = vmatpush.msra.mxu0 0.0
        %298 = vmatpush.msra.mxu0 0.0
        %299 = vmatpush.msra.mxu0 0.0
        %300 = vmatpush.msra.mxu0 0.0
        %301 = vmatpush.msra.mxu0 0.0
        %302 = vmatpush.msra.mxu0 %v215
        %303 = vmatmul.f32.gmra.mxu0 %v276
        %v304 = vpop.f32.mrf.mxu0
        %v305 = vadd.f32 %v225, %v304
        %306 = vmatmul.f32.gmra.mxu0 %v279
        %v307 = vpop.f32.mrf.mxu0
        %v308 = vadd.f32 %v230, %v307
        %309 = vmatmul.f32.gmra.mxu0 %v282
        %v310 = vpop.f32.mrf.mxu0
        %v311 = vadd.f32 %v235, %v310
        %312 = vmatmul.f32.gmra.mxu0 %v285
        %v313 = vpop.f32.mrf.mxu0
        %v314 = vadd.f32 %v240, %v313
        %315 = vdwg.mxu0
        %316 = vmatpush.msra.mxu0 0.0
        %317 = vmatpush.msra.mxu0 0.0
        %318 = vmatpush.msra.mxu0 0.0
        %319 = vmatpush.msra.mxu0 0.0
        %320 = vmatpush.msra.mxu0 0.0
        %321 = vmatpush.msra.mxu0 0.0
        %322 = vmatpush.msra.mxu0 0.0
        %323 = vmatpush.msra.mxu0 0.0
        %324 = vmatpush.msra.mxu0 0.0
        %325 = vmatpush.msra.mxu0 0.0
        %326 = vmatpush.msra.mxu0 0.0
        %327 = vmatpush.msra.mxu0 0.0
        %328 = vmatpush.msra.mxu0 0.0
        %329 = vmatpush.msra.mxu0 0.0
        %330 = vmatpush.msra.mxu0 0.0
        %331 = vmatpush.msra.mxu0 %v216
        %332 = vmatmul.f32.gmra.mxu0 %v276
        %v333 = vpop.f32.mrf.mxu0
        %v334 = vadd.f32 %v225, %v333
        %335 = vmatmul.f32.gmra.mxu0 %v279
        %v336 = vpop.f32.mrf.mxu0
        %v337 = vadd.f32 %v230, %v336
        %338 = vmatmul.f32.gmra.mxu0 %v282
        %v339 = vpop.f32.mrf.mxu0
        %v340 = vadd.f32 %v235, %v339
        %341 = vmatmul.f32.gmra.mxu0 %v285
        %v342 = vpop.f32.mrf.mxu0
        %v343 = vadd.f32 %v240, %v342
        %344 = vdwg.mxu0
        %345 = vst [vmem:[%s203] sm:$0xff] %v305
        %346 = vst [vmem:[%s203 + $0x8] sm:$0xff] %v334
        %347 = vst [vmem:[%s203 + $0x10] sm:$0xff] %v308
        %348 = vst [vmem:[%s203 + $0x18] sm:$0xff] %v337
        %349 = vst [vmem:[%s203 + $0x20] sm:$0xff] %v311
        %350 = vst [vmem:[%s203 + $0x28] sm:$0xff] %v340
        %351 = vst [vmem:[%s203 + $0x30] sm:$0xff] %v314
        %352 = vst [vmem:[%s203 + $0x38] sm:$0xff] %v343
        %s353 = sand.u32 %s110, 1
        %s354 = scalar_lea.sflag [#allocation4], %s353
        %s355 = sand.u32 %s110, 1
        %s356 = smul.addr %s355, 64
        %s357 = scalar_lea.vmem [#allocation5], %s356
        // Predicated region
        $region37: #{tpu_custom_call.1} parent=31 // pred_check
          %p358 = pneg %p120
        $region38: #{tpu_custom_call.1} parent=31 // pred_check_branch
          %360 = sbr.rel (%p358) target = $region40
        $region39: #{tpu_custom_call.1} parent=31 // pred_region
          %s361 = smul.u32 2, %s23
          %363 = vsyncadd %s354, 0
          %s364 = smul.addr %s22, 8
          %s365 = sadd.s32 %s361, %s364
          %s366 = smul.addr %s365, 8
          %s367 = scalar_lea.hbm %s3, %s366
          %s368 = sshll.u32 %s357, 4
          %s369 = int_to_ptr.vmem [resolvable:$true] %s368
          %s370 = sshll.u32 %s367, 4
          %s371 = int_to_ptr.hbm [resolvable:$true] %s370
          %376 = dma.vmem_to_hbm [thread:$0]  %s369, 1024, %s371, %s354, 256, 256, 16
        $region40: #{tpu_custom_call.1} parent=31 // pred_fallthru
          _
      $region32: #{tpu_custom_call.1} parent=5 // pred_fallthru
        _
      %p377 = scmp.le.s32.totalorder 2, %s13
      // Predicated region
      $region41: #{tpu_custom_call.1} parent=5 // pred_check
        %p378 = pneg %p377
      $region42: #{tpu_custom_call.1} parent=5 // pred_check_branch
        %380 = sbr.rel (%p378) target = $region44
      $region43: #{tpu_custom_call.1} parent=5 // pred_region
        %s381 = ssub.s32 %s13, 2
        // Predicated region
        $region45: #{tpu_custom_call.1} parent=43 // pred_check
          %p382 = pneg %p126
        $region46: #{tpu_custom_call.1} parent=43 // pred_check_branch
          %384 = sbr.rel (%p382) target = $region48
        $region47: #{tpu_custom_call.1} parent=43 // pred_region
          %s385 = sand.u32 %s111, 1
          %s386 = scalar_lea.sflag [#allocation4], %s385
          %s387 = sand.u32 %s111, 1
          %s388 = smul.addr %s387, 64
          %s389 = scalar_lea.vmem [#allocation5], %s388
          %391 = dma.done %s386, 1024
        $region48: #{tpu_custom_call.1} parent=43 // pred_fallthru
          _
      $region44: #{tpu_custom_call.1} parent=5 // pred_fallthru
        _
    $region6: #{tpu_custom_call.1} parent=1 // loop_footer
      %s17 = sadd.s32 1, %s13
    $region7: #{tpu_custom_call.1} parent=1 // loop_footer_branch
      %12 = sbr.rel target = $region3
    $region8: #{tpu_custom_call.1} parent=1 // loop_exit
      _
    %392 = vsyncpa [#allocation3], 1
    %s393 = scalar_lea.sflag [#allocation3], 1
    %394 = vsyncpa %s393, 1
    %395 = vsyncpa [#allocation4], 1
    %s396 = scalar_lea.sflag [#allocation4], 1
    %397 = vsyncpa %s396, 1

</llo_original>
